<compile_context>
chip_gen: v7x
topology: tpu7x:2x2x1
jax: 0.10.0
libtpu: 0.0.40
codegen_flags: <defaults>
</compile_context>

<pallas_src>
import functools

import jax
import jax.numpy as jnp
from jax.experimental import pallas as pl
from jax.experimental.pallas import tpu as pltpu


def _round_up(a, b):
    return (a + b - 1) // b * b


def _offset_scale_kernel(x_ref, gamma_ref, beta_ref, *out_refs):
    # x_ref:     (TM, Df)  current row tile (possibly lane-folded)
    # gamma_ref: (H,  Df)  resident scales   (constant index_map)
    # beta_ref:  (H,  Df)  resident offsets  (constant index_map)
    # out_refs:  H refs of (TM, Df), one per head
    x = x_ref[...]                       # load the tile once, reuse for all heads
    H = gamma_ref.shape[0]
    for h in range(H):                   # static loop, H is small
        g = gamma_ref[h:h + 1, :]        # (1, Df) static slice, VPU broadcasts
        b = beta_ref[h:h + 1, :]
        out_refs[h][...] = x * g + b


@functools.partial(jax.jit, static_argnames=("block_rows",))
def offset_scale(x, gamma, beta, block_rows=512):
    """Equivalent of OffsetScale.forward.

    x: (..., D); gamma, beta: (H, D).
    Returns tuple of H arrays, each of shape (..., D).
    """
    *lead, D = x.shape
    H = gamma.shape[0]
    M = 1
    for s in lead:
        M *= s
    x2d = x.reshape(M, D)
    itemsize = jnp.dtype(x2d.dtype).itemsize

    # Lane-density: fold rows into lanes when D < 128 so stores are
    # unmasked (full 128-lane) vst instead of masked partial stores.
    if D < 128 and 128 % D == 0:
        fold = 128 // D
    else:
        fold = 1
    Df = D * fold
    Mf = (M + fold - 1) // fold          # folded row count (pre row-pad)

    # Row-tile size: multiple of 8 sublanes, capped so the double-buffered
    # working set (x + H outputs) stays well inside the smallest scoped-VMEM
    # default (v5e: 16 MiB; v7x: 32 MiB of 64 MiB physical).
    vmem_budget = 12 * 1024 * 1024
    bytes_per_row = Df * itemsize * (2 + 2 * H)    # 2-deep buffers for in + outs
    tm_cap = max(8, (vmem_budget // bytes_per_row) // 8 * 8)
    TM = min(block_rows, tm_cap, _round_up(Mf, 8))

    Mfp = _round_up(Mf, TM)              # folded rows, padded to a tile multiple
    M_padded = Mfp * fold
    if M_padded != M:
        x2d = jnp.pad(x2d, ((0, M_padded - M), (0, 0)))
    xf = x2d.reshape(Mfp, Df)            # contiguous row-major fold (no copy)

    # Tile gamma/beta along lanes to match the folded layout (tiny arrays).
    gamma_f = jnp.tile(gamma, (1, fold)) if fold > 1 else gamma
    beta_f = jnp.tile(beta, (1, fold)) if fold > 1 else beta

    grid = (Mfp // TM,)

    out_shapes = tuple(
        jax.ShapeDtypeStruct((Mfp, Df), x2d.dtype) for _ in range(H)
    )
    out_specs = tuple(
        pl.BlockSpec((TM, Df), lambda i: (i, 0)) for _ in range(H)
    )

    cost = pl.CostEstimate(
        flops=2 * H * Mfp * Df,
        transcendentals=0,
        bytes_accessed=(Mfp * Df + H * Mfp * Df + 2 * H * Df) * itemsize,
    )

    outs = pl.pallas_call(
        _offset_scale_kernel,
        out_shape=out_shapes,
        grid_spec=pl.GridSpec(
            grid=grid,
            in_specs=[
                # row tile of the (folded) input
                pl.BlockSpec((TM, Df), lambda i: (i, 0)),
                # gamma/beta: full arrays, constant index -> VMEM-resident
                pl.BlockSpec((H, Df), lambda i: (0, 0)),
                pl.BlockSpec((H, Df), lambda i: (0, 0)),
            ],
            out_specs=out_specs,
        ),
        compiler_params=pltpu.CompilerParams(
            dimension_semantics=("parallel",),   # row-tile axis -> v7x megacore
        ),
        cost_estimate=cost,
    )(xf, gamma_f, beta_f)

    # Unfold lanes back to rows, drop padding, restore leading dims.
    result = []
    for o in outs:
        o = o.reshape(M_padded, D)
        if M_padded != M:
            o = o[:M]
        result.append(o.reshape(*lead, D))
    return tuple(result)


if __name__ == "__main__":
    # Small shapes consistent with the module's forward:
    #   x: (batch=2, seq=8, dim=32), heads=2
    B, S, D, H = 2, 8, 32, 2

    key = jax.random.PRNGKey(0)
    kx, kg = jax.random.split(key)

    x = jax.random.normal(kx, (B, S, D), dtype=jnp.float32)
    # Deterministic parameter init mirroring __init__:
    #   gamma = ones then nn.init.normal_(std=0.02); beta = zeros.
    gamma = 0.02 * jax.random.normal(kg, (H, D), dtype=jnp.float32)
    beta = jnp.zeros((H, D), dtype=jnp.float32)

    outs = offset_scale(x, gamma, beta)
    outs = jax.block_until_ready(outs)

    # Reference check (pure JAX) for the same semantics.
    ref = x[..., None, :] * gamma + beta           # (B, S, H, D)
    ok = True
    for h in range(H):
        ok &= outs[h].shape == (B, S, D)
        ok &= bool(jnp.allclose(outs[h], ref[..., h, :], atol=1e-6, rtol=1e-6))
    assert ok
    print("KERNEL_OK")
</pallas_src>

<mosaic_0001>
module attributes {stable_mosaic.version = 11 : i64} {
  func.func @_offset_scale_kernel(%arg0: i32, %arg1: memref<8x128xf32, #tpu.memory_space<vmem>>, %arg2: memref<2x128xf32, #tpu.memory_space<vmem>>, %arg3: memref<2x128xf32, #tpu.memory_space<vmem>>, %arg4: memref<8x128xf32, #tpu.memory_space<vmem>>, %arg5: memref<8x128xf32, #tpu.memory_space<vmem>>) attributes {dimension_semantics = [#tpu.dimension_semantics<parallel>], iteration_bounds = array<i64: 1>, scalar_prefetch = 0 : i64, scratch_operands = 0 : i64, tpu.core_type = #tpu.core_type<tc>, window_params = [{transform_indices = @transform_0, window_bounds = array<i64: 8, 128>}, {pipeline_mode = #tpu.pipeline_mode<synchronous>, transform_indices = @transform_1, window_bounds = array<i64: 2, 128>}, {pipeline_mode = #tpu.pipeline_mode<synchronous>, transform_indices = @transform_2, window_bounds = array<i64: 2, 128>}, {transform_indices = @transform_3, window_bounds = array<i64: 8, 128>}, {transform_indices = @transform_4, window_bounds = array<i64: 8, 128>}]} {
    %c0 = arith.constant 0 : index
    %c0_0 = arith.constant 0 : index
    %0 = vector.load %arg1[%c0, %c0_0] : memref<8x128xf32, #tpu.memory_space<vmem>>, vector<8x128xf32>
    %c0_1 = arith.constant 0 : index
    %c0_2 = arith.constant 0 : index
    %1 = vector.load %arg2[%c0_1, %c0_2] : memref<2x128xf32, #tpu.memory_space<vmem>>, vector<1x128xf32>
    %c0_3 = arith.constant 0 : index
    %c0_4 = arith.constant 0 : index
    %2 = vector.load %arg3[%c0_3, %c0_4] : memref<2x128xf32, #tpu.memory_space<vmem>>, vector<1x128xf32>
    %3 = vector.broadcast %1 : vector<1x128xf32> to vector<8x128xf32>
    %4 = arith.mulf %0, %3 : vector<8x128xf32>
    %5 = vector.broadcast %2 : vector<1x128xf32> to vector<8x128xf32>
    %6 = arith.addf %4, %5 : vector<8x128xf32>
    %c0_5 = arith.constant 0 : index
    %c0_6 = arith.constant 0 : index
    %7 = vector.load %arg4[%c0_5, %c0_6] : memref<8x128xf32, #tpu.memory_space<vmem>>, vector<8x128xf32>
    tpu.vector_store %arg4[%c0_5, %c0_6], %6 {strides = array<i32>} : memref<8x128xf32, #tpu.memory_space<vmem>>, vector<8x128xf32>,
    %c1 = arith.constant 1 : index
    %c0_7 = arith.constant 0 : index
    %8 = vector.load %arg2[%c1, %c0_7] : memref<2x128xf32, #tpu.memory_space<vmem>>, vector<1x128xf32>
    %c1_8 = arith.constant 1 : index
    %c0_9 = arith.constant 0 : index
    %9 = vector.load %arg3[%c1_8, %c0_9] : memref<2x128xf32, #tpu.memory_space<vmem>>, vector<1x128xf32>
    %10 = vector.broadcast %8 : vector<1x128xf32> to vector<8x128xf32>
    %11 = arith.mulf %0, %10 : vector<8x128xf32>
    %12 = vector.broadcast %9 : vector<1x128xf32> to vector<8x128xf32>
    %13 = arith.addf %11, %12 : vector<8x128xf32>
    %c0_10 = arith.constant 0 : index
    %c0_11 = arith.constant 0 : index
    %14 = vector.load %arg5[%c0_10, %c0_11] : memref<8x128xf32, #tpu.memory_space<vmem>>, vector<8x128xf32>
    tpu.vector_store %arg5[%c0_10, %c0_11], %13 {strides = array<i32>} : memref<8x128xf32, #tpu.memory_space<vmem>>, vector<8x128xf32>,
    return
  }
  func.func @transform_0(%arg0: i32) -> (i32, i32) {
    %c0_i32 = arith.constant 0 : i32
    %c0_i32_0 = arith.constant 0 : i32
    return %arg0, %c0_i32 : i32, i32
  }
  func.func @transform_1(%arg0: i32) -> (i32, i32) {
    %c0_i32 = arith.constant 0 : i32
    %c0_i32_0 = arith.constant 0 : i32
    %c0_i32_1 = arith.constant 0 : i32
    return %c0_i32, %c0_i32_0 : i32, i32
  }
  func.func @transform_2(%arg0: i32) -> (i32, i32) {
    %c0_i32 = arith.constant 0 : i32
    %c0_i32_0 = arith.constant 0 : i32
    %c0_i32_1 = arith.constant 0 : i32
    return %c0_i32, %c0_i32_0 : i32, i32
  }
  func.func @transform_3(%arg0: i32) -> (i32, i32) {
    %c0_i32 = arith.constant 0 : i32
    %c0_i32_0 = arith.constant 0 : i32
    return %arg0, %c0_i32 : i32, i32
  }
  func.func @transform_4(%arg0: i32) -> (i32, i32) {
    %c0_i32 = arith.constant 0 : i32
    %c0_i32_0 = arith.constant 0 : i32
    return %arg0, %c0_i32 : i32, i32
  }
}

</mosaic_0001>

<llo_original>
// kernel: tile.14
$region0: #{tile.14}
  %s0 = inlined_call_operand.vmem [shape: f32[2,4,32], index: 0, kind: input, shape index: {}]
  %s1 = inlined_call_operand.vmem [shape: f32[2,128], index: 1, kind: output, shape index: {}]
  $region1: #{tile.14} parent=0
    #allocation0 [shape = 'u8[4096]{0}', space=vmem, size = 0x1000, scoped, tag = 'scoped mem for output reshape']
    #allocation1 [shape = 'u8[8192]{0}', space=vmem, size = 0x2000, scoped, tag = 'scoped mem for input reshape']
    %s3 = sshllo.u32 0, 4
    %s4 = scalar_lea.vmem %s0, 4
    %v5 = vld [vmem:[%s4] sm:%s3]
    %s6 = scalar_lea.vmem [#allocation1], 8
    %7 = vst [vmem:[%s6] sm:%s3] %v5
    %v8 = vld [vmem:[%s0] sm:%s3]
    %9 = vst [vmem:[#allocation1] sm:%s3] %v8
    %s10 = smov 3
    %v11 = vld [vmem:[#allocation1] ss:$8 sm:%s10]
    %vm12 = vcmask 261120
    %13 = vst.msk [vmem:[#allocation0] sm:$0x3] %vm12, %v11
    %s14 = scalar_lea.vmem [#allocation1], 3
    %s15 = smov 3
    %v16 = vld [vmem:[%s14] ss:$8 sm:%s15]
    %17 = vrot.lane.b32.xlu0 %v16, 96
    %v18 = vpop.permute.xlu0 %17
    %vm19 = vcmask 1048320
    %20 = vst.msk [vmem:[#allocation0] sm:$0x3] %vm19, %v18
    %s21 = scalar_lea.vmem [#allocation1], 2
    %s22 = smov 3
    %v23 = vld [vmem:[%s21] ss:$8 sm:%s22]
    %24 = vrot.lane.b32.xlu0 %v23, 64
    %v25 = vpop.permute.xlu0 %24
    %vm26 = vcmask 785920
    %27 = vst.msk [vmem:[#allocation0] sm:$0x3] %vm26, %v25
    %s28 = scalar_lea.vmem [#allocation1], 1
    %s29 = smov 3
    %v30 = vld [vmem:[%s28] ss:$8 sm:%s29]
    %31 = vrot.lane.b32.xlu0 %v30, 32
    %v32 = vpop.permute.xlu0 %31
    %vm33 = vcmask 523520
    %34 = vst.msk [vmem:[#allocation0] sm:$0x3] %vm33, %v32
    %s36 = sshllo.u32 0, 2
    %v38 = vld [vmem:[#allocation0] sm:%s36]
    %s39 = sshllo.u32 0, 2
    %40 = vst [vmem:[%s1] sm:%s39] %v38

// kernel: offset_scale.1
$region0: #{offset_scale.1}
  #allocation0 [shape = 'u32[]', space=smem, size = 0x4, offset = 0x4, fixed_abs, tag = 'smem constant byte address 0x4 - core index']
  #allocation1 [shape = 'u32[144,128]{1,0:T(1,128)}', space=vmem, size = 0x12000, scoped, tag = 'internal scratch']
  %s0 = inlined_call_operand.vmem [shape: f32[8,128], index: 0, kind: input, shape index: {}]
  %s1 = inlined_call_operand.vmem [shape: f32[2,128], index: 1, kind: input, shape index: {}]
  %s2 = inlined_call_operand.vmem [shape: f32[2,128], index: 2, kind: input, shape index: {}]
  %s3 = inlined_call_operand.vmem [shape: f32[8,128], index: 3, kind: output, shape index: {0}]
  %s4 = inlined_call_operand.vmem [shape: f32[8,128], index: 4, kind: output, shape index: {1}]
  %5 = xla_tuple %s3, %s4
  %s6 = sld [smem:[#allocation0]]
  $region30: #{offset_scale.1} parent=0
    _
  %s8 = ssub.s32 1, %s6
  %s9 = scalar_select 0, %s8, %s6
  // Predicated region
  $region2: #{offset_scale.1} parent=0 // pred_check
    _
  $region3: #{offset_scale.1} parent=0 // pred_check_branch
    %11 = sbr.rel (0) target = $region5
  $region4: #{offset_scale.1} parent=0 // pred_region
    _
  $region5: #{offset_scale.1} parent=0 // pred_fallthru
    _
  // Predicated region
  $region6: #{offset_scale.1} parent=0 // pred_check
    _
  $region7: #{offset_scale.1} parent=0 // pred_check_branch
    %13 = sbr.rel (0) target = $region9
  $region8: #{offset_scale.1} parent=0 // pred_region
    _
  $region9: #{offset_scale.1} parent=0 // pred_fallthru
    _
  // Predicated region
  $region10: #{offset_scale.1} parent=0 // pred_check
    _
  $region11: #{offset_scale.1} parent=0 // pred_check_branch
    %15 = sbr.rel (0) target = $region13
  $region12: #{offset_scale.1} parent=0 // pred_region
    _
  $region13: #{offset_scale.1} parent=0 // pred_fallthru
    _
  %v16 = vld [vmem:[%s0] sm:$0xff]
  %v17 = vld [vmem:[%s1] sm:$0x1]
  %v18 = vld [vmem:[%s2] sm:$0x1]
  %v19 = vlaneseq
  %v20 = vshrl.u32 %v19, 7
  %v21 = vsub.s32 0, %v20
  %v22 = vrot.slane %v17, %v21
  %v23 = vmul.f32 %v16, %v22
  %v24 = vlaneseq
  %v25 = vshrl.u32 %v24, 7
  %v26 = vsub.s32 0, %v25
  %v27 = vrot.slane %v18, %v26
  %v28 = vadd.f32 %v23, %v27
  %29 = vst [vmem:[%s3] sm:$0xff] %v28
  %v30 = vld [vmem:[%s1 + $0x1] sm:$0x1]
  %v31 = vld [vmem:[%s2 + $0x1] sm:$0x1]
  %v32 = vlaneseq
  %v33 = vshrl.u32 %v32, 7
  %v34 = vsub.s32 0, %v33
  %v35 = vrot.slane %v30, %v34
  %v36 = vmul.f32 %v16, %v35
  %v37 = vlaneseq
  %v38 = vshrl.u32 %v37, 7
  %v39 = vsub.s32 0, %v38
  %v40 = vrot.slane %v31, %v39
  %v41 = vadd.f32 %v36, %v40
  %42 = vst [vmem:[%s4] sm:$0xff] %v41
  // Predicated region
  $region14: #{offset_scale.1} parent=0 // pred_check
    _
  $region15: #{offset_scale.1} parent=0 // pred_check_branch
    %44 = sbr.rel (0) target = $region17
  $region16: #{offset_scale.1} parent=0 // pred_region
    _
  $region17: #{offset_scale.1} parent=0 // pred_fallthru
    _
  // Predicated region
  $region18: #{offset_scale.1} parent=0 // pred_check
    _
  $region19: #{offset_scale.1} parent=0 // pred_check_branch
    %46 = sbr.rel (0) target = $region21
  $region20: #{offset_scale.1} parent=0 // pred_region
    _
  $region21: #{offset_scale.1} parent=0 // pred_fallthru
    _
  // Predicated region
  $region22: #{offset_scale.1} parent=0 // pred_check
    _
  $region23: #{offset_scale.1} parent=0 // pred_check_branch
    %48 = sbr.rel (0) target = $region25
  $region24: #{offset_scale.1} parent=0 // pred_region
    _
  $region25: #{offset_scale.1} parent=0 // pred_fallthru
    _
  // Predicated region
  $region26: #{offset_scale.1} parent=0 // pred_check
    _
  $region27: #{offset_scale.1} parent=0 // pred_check_branch
    %50 = sbr.rel (0) target = $region29
  $region28: #{offset_scale.1} parent=0 // pred_region
    _
  $region29: #{offset_scale.1} parent=0 // pred_fallthru
    _

</llo_original>
